<compile_context>
chip_gen: v6e
topology: v6e:2x2x1
jax: 0.10.0
libtpu: 0.0.40
codegen_flags: <defaults>
</compile_context>

<pallas_src>
import functools
import math

import jax
import jax.numpy as jnp
from jax.experimental import pallas as pl
from jax.experimental.pallas import tpu as pltpu


def _mpc_kernel(w_ref, b_ref, a_ref, h_ref, o_ref, *, tap_offsets):
    # w_ref: (f*f, Cout, Cin) bf16  per-tap weights (resident, single-buffered)
    # b_ref: (Cout, 1)        f32   bias            (resident, single-buffered)
    # a_ref: (Cin, TM)        bf16  pooled/padded input columns of this tile
    # h_ref: (1, Cin, halo)   bf16  first `halo` columns of the *next* tile
    # o_ref: (Cout, TM)             output tile ("wide" flat layout, lane-dense)
    tm = a_ref.shape[-1]
    a_full = jnp.concatenate([a_ref[...], h_ref[0]], axis=-1)   # (Cin, TM + halo)
    acc = None
    for t, off in enumerate(tap_offsets):
        # One MXU matmul per conv tap over the shared window; the tap shift is a
        # cheap static 32-bit lane-offset slice of the f32 result.
        y = jnp.dot(w_ref[t], a_full, preferred_element_type=jnp.float32)
        c = y[:, off:off + tm]
        acc = c if acc is None else acc + c
    o_ref[...] = (acc + b_ref[...]).astype(o_ref.dtype)


def mean_pool_conv(x_nchw, weight_oihw, bias, filter_size, *, tile_m=None,
                   stream_dtype=jnp.bfloat16):
    """AvgPool2d(2) followed by Conv2d(..., padding=(f-1)//2, stride=1) + bias."""
    N, Cin, H, W = x_nchw.shape
    assert H % 2 == 0 and W % 2 == 0, "AvgPool2d(2) expects even spatial dims"
    f = int(filter_size)
    assert f % 2 == 1, "padding='same' folding here requires an odd filter_size"
    Cout = weight_oihw.shape[0]
    p = (f - 1) // 2
    Hp, Wp = H // 2, W // 2
    Hpad, Wpad = Hp + 2 * p, Wp + 2 * p

    # "Wide" flat layout: input and output both use per-image stride Hpad*Wpad,
    # so conv tap (kh, kw) reads input column m + kh*Wpad + kw for every output
    # column m.  Only the top-left (Hp, Wp) corner of each image block is a
    # valid output; the rest is garbage sliced off afterwards.
    M = N * Hpad * Wpad
    tap_offsets = tuple(kh * Wpad + kw for kh in range(f) for kw in range(f))
    max_off = tap_offsets[-1]
    halo = max(128, pl.cdiv(max_off, 128) * 128)

    a_bytes = jnp.dtype(stream_dtype).itemsize
    o_bytes = jnp.dtype(x_nchw.dtype).itemsize

    # Generation-aware VMEM budget (v7x: 64 MiB/TC, v5e/v6e: 128 MiB).
    try:
        vmem_cap = int(pltpu.get_tpu_info().vmem_capacity_bytes)
    except Exception:
        vmem_cap = 64 * 1024 * 1024
    vmem_limit = min(int(0.6 * vmem_cap), 96 * 1024 * 1024)

    if tile_m is None:
        per_col = (2 * Cin * a_bytes          # streamed A tile, double-buffered
                   + 2 * Cout * o_bytes       # output tile, double-buffered
                   + Cin * a_bytes            # a_full temp
                   + 3 * Cout * 4)            # f32 acc / per-tap slices
        fixed = (f * f * Cout * Cin * a_bytes # resident tap weights
                 + 2 * Cin * halo * a_bytes   # halo side-buffers
                 + (1 << 20))                 # slack
        budget_cols = max(128, (int(0.75 * vmem_limit) - fixed) // per_col)
        # Aim for >= ~4 grid steps when the problem allows, so v7x's two
        # TensorCores both get work and the DMA pipeline has steps to overlap.
        tile_m = min(2048, budget_cols,
                     max(128, pl.cdiv(pl.cdiv(M, 4), 128) * 128))
    tile_m = max(int(tile_m), halo, 128)
    tile_m = pl.cdiv(tile_m, 128) * 128          # lane-aligned tiles, full vst
    n_tiles = pl.cdiv(M, tile_m)
    m_pad = n_tiles * tile_m

    # ---------------- layout glue (pure JAX, ~one cheap pass) ----------------
    pooled = x_nchw.reshape(N, Cin, Hp, 2, Wp, 2).mean(axis=(3, 5))   # (N,Cin,Hp,Wp)
    xk = jnp.transpose(pooled, (1, 0, 2, 3))                          # (Cin,N,Hp,Wp)
    xk = jnp.pad(xk, ((0, 0), (0, 0), (p, p), (p, p)))                # 'same' zero pad
    xk = xk.reshape(Cin, M)
    # Pad columns to m_pad + tile_m (zero tail) so the last tile's halo and the
    # M-padding reads stay in bounds; cast the streamed operand to bf16.
    xk = jnp.pad(xk, ((0, 0), (0, m_pad + tile_m - M))).astype(stream_dtype)

    # Tiny halo side-array: first `halo` columns of each tile's successor.
    halo_arr = jnp.transpose(
        xk[:, tile_m:].reshape(Cin, n_tiles, tile_m)[:, :, :halo], (1, 0, 2))

    # Per-tap weights (f*f, Cout, Cin) in bf16; bias stays f32.
    w_taps = jnp.transpose(weight_oihw, (2, 3, 0, 1)).reshape(f * f, Cout, Cin)
    w_taps = w_taps.astype(stream_dtype)
    b2 = bias.reshape(Cout, 1).astype(jnp.float32)

    grid_spec = pltpu.PrefetchScalarGridSpec(
        num_scalar_prefetch=0,
        grid=(n_tiles,),
        in_specs=[
            pl.BlockSpec((f * f, Cout, Cin), lambda m: (0, 0, 0),
                         pipeline_mode=pl.Buffered(1)),         # resident weights
            pl.BlockSpec((Cout, 1), lambda m: (0, 0),
                         pipeline_mode=pl.Buffered(1)),         # resident bias
            pl.BlockSpec((Cin, tile_m), lambda m: (0, m)),      # streamed pooled tile
            pl.BlockSpec((1, Cin, halo), lambda m: (m, 0, 0)),  # halo of next tile
        ],
        out_specs=pl.BlockSpec((Cout, tile_m), lambda m: (0, m)),
    )
    # TODO(synk): for large Cout add a Cout grid axis (tile to 128/256 MXU rows);
    # if xprof shows exposed DMA on the streamed tile, bump it to pl.Buffered(3).

    out_wide = pl.pallas_call(
        functools.partial(_mpc_kernel, tap_offsets=tap_offsets),
        out_shape=jax.ShapeDtypeStruct((Cout, m_pad), x_nchw.dtype),
        grid_spec=grid_spec,
        compiler_params=pltpu.CompilerParams(
            dimension_semantics=("parallel",),
            vmem_limit_bytes=vmem_limit,
        ),
    )(w_taps, b2, xk, halo_arr)

    # Columns >= M are zero-input + bias garbage; this slice is what keeps that
    # harmless -- preserve it if the padding strategy ever changes.
    out = out_wide[:, :M].reshape(Cout, N, Hpad, Wpad)[:, :, :Hp, :Wp]
    return jnp.transpose(out, (1, 0, 2, 3))                     # (N, Cout, Hp, Wp)


def _reference_forward(x_nchw, weight_oihw, bias, filter_size):
    """Pure-JAX reference: AvgPool2d(2) then 'same' Conv2d, NCHW."""
    f = filter_size
    p = (f - 1) // 2
    pooled = jax.lax.reduce_window(x_nchw, 0.0, jax.lax.add,
                                   (1, 1, 2, 2), (1, 1, 2, 2), 'VALID') / 4.0
    out = jax.lax.conv_general_dilated(
        pooled, weight_oihw, window_strides=(1, 1),
        padding=[(p, p), (p, p)],
        dimension_numbers=('NCHW', 'OIHW', 'NCHW'))
    return out + bias.reshape(1, -1, 1, 1)


if __name__ == "__main__":
    key = jax.random.PRNGKey(0)
    kx, kw, kb = jax.random.split(key, 3)

    # Small shapes consistent with the module's forward.
    N, Cin, H, W = 2, 4, 16, 16
    Cout, f = 8, 3

    x = jax.random.normal(kx, (N, Cin, H, W), jnp.float32)

    # Parameter init mimicking the PyTorch module:
    # nn.init.kaiming_uniform_(conv.weight) -> U(-sqrt(6/fan_in), +sqrt(6/fan_in))
    fan_in = Cin * f * f
    bound_w = math.sqrt(6.0 / fan_in)
    weight = jax.random.uniform(kw, (Cout, Cin, f, f), jnp.float32,
                                -bound_w, bound_w)
    # default Conv2d bias init: U(-1/sqrt(fan_in), +1/sqrt(fan_in))
    bound_b = 1.0 / math.sqrt(fan_in)
    bias = jax.random.uniform(kb, (Cout,), jnp.float32, -bound_b, bound_b)

    out = jax.block_until_ready(mean_pool_conv(x, weight, bias, f))

    ref = _reference_forward(x, weight, bias, f)
    assert out.shape == ref.shape == (N, Cout, H // 2, W // 2), (out.shape, ref.shape)
    # bf16-streamed operands (f32 accumulation) => bf16-level tolerance vs f32 ref.
    err = float(jnp.max(jnp.abs(out - ref)))
    assert jnp.allclose(out, ref, atol=2e-2, rtol=2e-2), f"mismatch vs reference, max|err|={err}"

    print("KERNEL_OK")
</pallas_src>

<mosaic_0001>
module attributes {stable_mosaic.version = 11 : i64} {
  func.func @_mpc_kernel(%arg0: i32, %arg1: memref<9x8x4xbf16, #tpu.memory_space<vmem>>, %arg2: memref<8x1xf32, #tpu.memory_space<vmem>>, %arg3: memref<4x128xbf16, #tpu.memory_space<vmem>>, %arg4: memref<1x4x128xbf16, #tpu.memory_space<vmem>>, %arg5: memref<8x128xf32, #tpu.memory_space<vmem>>) attributes {dimension_semantics = [#tpu.dimension_semantics<parallel>], iteration_bounds = array<i64: 2>, scalar_prefetch = 0 : i64, scratch_operands = 0 : i64, tpu.core_type = #tpu.core_type<tc>, window_params = [{pipeline_mode = #tpu.pipeline_mode<synchronous>, transform_indices = @transform_0, window_bounds = array<i64: 9, 8, 4>}, {pipeline_mode = #tpu.pipeline_mode<synchronous>, transform_indices = @transform_1, window_bounds = array<i64: 8, 1>}, {transform_indices = @transform_2, window_bounds = array<i64: 4, 128>}, {transform_indices = @transform_3, window_bounds = array<i64: 1, 4, 128>}, {transform_indices = @transform_4, window_bounds = array<i64: 8, 128>}]} {
    %c0 = arith.constant 0 : index
    %c0_0 = arith.constant 0 : index
    %0 = vector.load %arg3[%c0, %c0_0] : memref<4x128xbf16, #tpu.memory_space<vmem>>, vector<4x128xbf16>
    %c0_1 = arith.constant 0 : index
    %c0_2 = arith.constant 0 : index
    %c0_3 = arith.constant 0 : index
    %1 = vector.load %arg4[%c0_1, %c0_2, %c0_3] : memref<1x4x128xbf16, #tpu.memory_space<vmem>>, vector<1x4x128xbf16>
    %2 = vector.shape_cast %1 : vector<1x4x128xbf16> to vector<4x128xbf16>
    %3 = tpu.concatenate %0, %2 in 1 : vector<4x128xbf16>, vector<4x128xbf16> -> vector<4x256xbf16>
    %c0_4 = arith.constant 0 : index
    %c0_5 = arith.constant 0 : index
    %c0_6 = arith.constant 0 : index
    %4 = vector.load %arg1[%c0_4, %c0_5, %c0_6] : memref<9x8x4xbf16, #tpu.memory_space<vmem>>, vector<1x8x4xbf16>
    %5 = vector.shape_cast %4 : vector<1x8x4xbf16> to vector<8x4xbf16>
    %cst = arith.constant dense<0.000000e+00> : vector<8x256xf32>
    %6 = tpu.matmul %5, %3, %cst {dimension_numbers = #tpu.dot_dimension_numbers<[1], [0], [0], [1], [0, 0, 1, 1], [], []>} : vector<8x4xbf16>, vector<4x256xbf16>, vector<8x256xf32> -> vector<8x256xf32>
    %7 = vector.extract_strided_slice %6 {offsets = [0, 0], sizes = [8, 128], strides = [1, 1]} : vector<8x256xf32> to vector<8x128xf32>
    %c1 = arith.constant 1 : index
    %c0_7 = arith.constant 0 : index
    %c0_8 = arith.constant 0 : index
    %8 = vector.load %arg1[%c1, %c0_7, %c0_8] : memref<9x8x4xbf16, #tpu.memory_space<vmem>>, vector<1x8x4xbf16>
    %9 = vector.shape_cast %8 : vector<1x8x4xbf16> to vector<8x4xbf16>
    %cst_9 = arith.constant dense<0.000000e+00> : vector<8x256xf32>
    %10 = tpu.matmul %9, %3, %cst_9 {dimension_numbers = #tpu.dot_dimension_numbers<[1], [0], [0], [1], [0, 0, 1, 1], [], []>} : vector<8x4xbf16>, vector<4x256xbf16>, vector<8x256xf32> -> vector<8x256xf32>
    %11 = vector.extract_strided_slice %10 {offsets = [0, 1], sizes = [8, 128], strides = [1, 1]} : vector<8x256xf32> to vector<8x128xf32>
    %12 = arith.addf %7, %11 : vector<8x128xf32>
    %c2 = arith.constant 2 : index
    %c0_10 = arith.constant 0 : index
    %c0_11 = arith.constant 0 : index
    %13 = vector.load %arg1[%c2, %c0_10, %c0_11] : memref<9x8x4xbf16, #tpu.memory_space<vmem>>, vector<1x8x4xbf16>
    %14 = vector.shape_cast %13 : vector<1x8x4xbf16> to vector<8x4xbf16>
    %cst_12 = arith.constant dense<0.000000e+00> : vector<8x256xf32>
    %15 = tpu.matmul %14, %3, %cst_12 {dimension_numbers = #tpu.dot_dimension_numbers<[1], [0], [0], [1], [0, 0, 1, 1], [], []>} : vector<8x4xbf16>, vector<4x256xbf16>, vector<8x256xf32> -> vector<8x256xf32>
    %16 = vector.extract_strided_slice %15 {offsets = [0, 2], sizes = [8, 128], strides = [1, 1]} : vector<8x256xf32> to vector<8x128xf32>
    %17 = arith.addf %12, %16 : vector<8x128xf32>
    %c3 = arith.constant 3 : index
    %c0_13 = arith.constant 0 : index
    %c0_14 = arith.constant 0 : index
    %18 = vector.load %arg1[%c3, %c0_13, %c0_14] : memref<9x8x4xbf16, #tpu.memory_space<vmem>>, vector<1x8x4xbf16>
    %19 = vector.shape_cast %18 : vector<1x8x4xbf16> to vector<8x4xbf16>
    %cst_15 = arith.constant dense<0.000000e+00> : vector<8x256xf32>
    %20 = tpu.matmul %19, %3, %cst_15 {dimension_numbers = #tpu.dot_dimension_numbers<[1], [0], [0], [1], [0, 0, 1, 1], [], []>} : vector<8x4xbf16>, vector<4x256xbf16>, vector<8x256xf32> -> vector<8x256xf32>
    %21 = vector.extract_strided_slice %20 {offsets = [0, 10], sizes = [8, 128], strides = [1, 1]} : vector<8x256xf32> to vector<8x128xf32>
    %22 = arith.addf %17, %21 : vector<8x128xf32>
    %c4 = arith.constant 4 : index
    %c0_16 = arith.constant 0 : index
    %c0_17 = arith.constant 0 : index
    %23 = vector.load %arg1[%c4, %c0_16, %c0_17] : memref<9x8x4xbf16, #tpu.memory_space<vmem>>, vector<1x8x4xbf16>
    %24 = vector.shape_cast %23 : vector<1x8x4xbf16> to vector<8x4xbf16>
    %cst_18 = arith.constant dense<0.000000e+00> : vector<8x256xf32>
    %25 = tpu.matmul %24, %3, %cst_18 {dimension_numbers = #tpu.dot_dimension_numbers<[1], [0], [0], [1], [0, 0, 1, 1], [], []>} : vector<8x4xbf16>, vector<4x256xbf16>, vector<8x256xf32> -> vector<8x256xf32>
    %26 = vector.extract_strided_slice %25 {offsets = [0, 11], sizes = [8, 128], strides = [1, 1]} : vector<8x256xf32> to vector<8x128xf32>
    %27 = arith.addf %22, %26 : vector<8x128xf32>
    %c5 = arith.constant 5 : index
    %c0_19 = arith.constant 0 : index
    %c0_20 = arith.constant 0 : index
    %28 = vector.load %arg1[%c5, %c0_19, %c0_20] : memref<9x8x4xbf16, #tpu.memory_space<vmem>>, vector<1x8x4xbf16>
    %29 = vector.shape_cast %28 : vector<1x8x4xbf16> to vector<8x4xbf16>
    %cst_21 = arith.constant dense<0.000000e+00> : vector<8x256xf32>
    %30 = tpu.matmul %29, %3, %cst_21 {dimension_numbers = #tpu.dot_dimension_numbers<[1], [0], [0], [1], [0, 0, 1, 1], [], []>} : vector<8x4xbf16>, vector<4x256xbf16>, vector<8x256xf32> -> vector<8x256xf32>
    %31 = vector.extract_strided_slice %30 {offsets = [0, 12], sizes = [8, 128], strides = [1, 1]} : vector<8x256xf32> to vector<8x128xf32>
    %32 = arith.addf %27, %31 : vector<8x128xf32>
    %c6 = arith.constant 6 : index
    %c0_22 = arith.constant 0 : index
    %c0_23 = arith.constant 0 : index
    %33 = vector.load %arg1[%c6, %c0_22, %c0_23] : memref<9x8x4xbf16, #tpu.memory_space<vmem>>, vector<1x8x4xbf16>
    %34 = vector.shape_cast %33 : vector<1x8x4xbf16> to vector<8x4xbf16>
    %cst_24 = arith.constant dense<0.000000e+00> : vector<8x256xf32>
    %35 = tpu.matmul %34, %3, %cst_24 {dimension_numbers = #tpu.dot_dimension_numbers<[1], [0], [0], [1], [0, 0, 1, 1], [], []>} : vector<8x4xbf16>, vector<4x256xbf16>, vector<8x256xf32> -> vector<8x256xf32>
    %36 = vector.extract_strided_slice %35 {offsets = [0, 20], sizes = [8, 128], strides = [1, 1]} : vector<8x256xf32> to vector<8x128xf32>
    %37 = arith.addf %32, %36 : vector<8x128xf32>
    %c7 = arith.constant 7 : index
    %c0_25 = arith.constant 0 : index
    %c0_26 = arith.constant 0 : index
    %38 = vector.load %arg1[%c7, %c0_25, %c0_26] : memref<9x8x4xbf16, #tpu.memory_space<vmem>>, vector<1x8x4xbf16>
    %39 = vector.shape_cast %38 : vector<1x8x4xbf16> to vector<8x4xbf16>
    %cst_27 = arith.constant dense<0.000000e+00> : vector<8x256xf32>
    %40 = tpu.matmul %39, %3, %cst_27 {dimension_numbers = #tpu.dot_dimension_numbers<[1], [0], [0], [1], [0, 0, 1, 1], [], []>} : vector<8x4xbf16>, vector<4x256xbf16>, vector<8x256xf32> -> vector<8x256xf32>
    %41 = vector.extract_strided_slice %40 {offsets = [0, 21], sizes = [8, 128], strides = [1, 1]} : vector<8x256xf32> to vector<8x128xf32>
    %42 = arith.addf %37, %41 : vector<8x128xf32>
    %c8 = arith.constant 8 : index
    %c0_28 = arith.constant 0 : index
    %c0_29 = arith.constant 0 : index
    %43 = vector.load %arg1[%c8, %c0_28, %c0_29] : memref<9x8x4xbf16, #tpu.memory_space<vmem>>, vector<1x8x4xbf16>
    %44 = vector.shape_cast %43 : vector<1x8x4xbf16> to vector<8x4xbf16>
    %cst_30 = arith.constant dense<0.000000e+00> : vector<8x256xf32>
    %45 = tpu.matmul %44, %3, %cst_30 {dimension_numbers = #tpu.dot_dimension_numbers<[1], [0], [0], [1], [0, 0, 1, 1], [], []>} : vector<8x4xbf16>, vector<4x256xbf16>, vector<8x256xf32> -> vector<8x256xf32>
    %46 = vector.extract_strided_slice %45 {offsets = [0, 22], sizes = [8, 128], strides = [1, 1]} : vector<8x256xf32> to vector<8x128xf32>
    %47 = arith.addf %42, %46 : vector<8x128xf32>
    %c0_31 = arith.constant 0 : index
    %c0_32 = arith.constant 0 : index
    %48 = vector.load %arg2[%c0_31, %c0_32] : memref<8x1xf32, #tpu.memory_space<vmem>>, vector<8x1xf32>
    %49 = vector.broadcast %48 : vector<8x1xf32> to vector<8x128xf32>
    %50 = arith.addf %47, %49 : vector<8x128xf32>
    %c0_33 = arith.constant 0 : index
    %c0_34 = arith.constant 0 : index
    %51 = vector.load %arg5[%c0_33, %c0_34] : memref<8x128xf32, #tpu.memory_space<vmem>>, vector<8x128xf32>
    tpu.vector_store %arg5[%c0_33, %c0_34], %50 {strides = array<i32>} : memref<8x128xf32, #tpu.memory_space<vmem>>, vector<8x128xf32>,
    return
  }
  func.func @transform_0(%arg0: i32) -> (i32, i32, i32) {
    %c0_i32 = arith.constant 0 : i32
    %c0_i32_0 = arith.constant 0 : i32
    %c0_i32_1 = arith.constant 0 : i32
    %c0_i32_2 = arith.constant 0 : i32
    return %c0_i32, %c0_i32_0, %c0_i32_1 : i32, i32, i32
  }
  func.func @transform_1(%arg0: i32) -> (i32, i32) {
    %c0_i32 = arith.constant 0 : i32
    %c0_i32_0 = arith.constant 0 : i32
    %c0_i32_1 = arith.constant 0 : i32
    return %c0_i32, %c0_i32_0 : i32, i32
  }
  func.func @transform_2(%arg0: i32) -> (i32, i32) {
    %c0_i32 = arith.constant 0 : i32
    %c0_i32_0 = arith.constant 0 : i32
    return %c0_i32, %arg0 : i32, i32
  }
  func.func @transform_3(%arg0: i32) -> (i32, i32, i32) {
    %c0_i32 = arith.constant 0 : i32
    %c0_i32_0 = arith.constant 0 : i32
    %c0_i32_1 = arith.constant 0 : i32
    return %arg0, %c0_i32, %c0_i32_0 : i32, i32, i32
  }
  func.func @transform_4(%arg0: i32) -> (i32, i32) {
    %c0_i32 = arith.constant 0 : i32
    %c0_i32_0 = arith.constant 0 : i32
    return %c0_i32, %arg0 : i32, i32
  }
}

</mosaic_0001>

<llo_original>
// kernel: tpu_custom_call.1
$region0: #{tpu_custom_call.1}
  #allocation0 [shape = 'u32[]', space=smem, size = 0x4, offset = 0x4, fixed_abs, tag = 'smem constant byte address 0x4 - core index']
  #allocation1 [shape = 'u32[144,128]{1,0:T(1,128)}', space=vmem, size = 0x12000, scoped, tag = 'internal scratch']
  %s0 = inlined_call_operand.vmem [shape: bf16[9,8,4], index: 0, kind: input, shape index: {}]
  %s1 = inlined_call_operand.vmem [shape: f32[8,1], index: 1, kind: input, shape index: {}]
  %s2 = inlined_call_operand.vmem [shape: bf16[4,384], index: 2, kind: input, shape index: {}]
  %s3 = inlined_call_operand.vmem [shape: bf16[2,4,128], index: 3, kind: input, shape index: {}]
  %s4 = inlined_call_operand.hbm [shape: f32[8,256], index: 4, kind: output, shape index: {}]
  %s5 = sld [smem:[#allocation0]]
  $region49: #{tpu_custom_call.1} parent=0
    _
  %s7 = ssub.s32 1, %s5
  %s8 = scalar_select 0, %s7, %s5
  $region1: #{tpu_custom_call.1} parent=0
    #allocation2 [shape = 'u8[8192]{0}', space=vmem, size = 0x2000, scoped, tag = 'output window, operand 0']
    #allocation3 [shape = 's32[2]{0}', space=sflag, size = 0x8, scoped, tag = 'scoped memory for tpu_custom_call.1']
    %9 = vsyncpa [#allocation3], 0
    %s10 = scalar_lea.sflag [#allocation3], 1
    %11 = vsyncpa %s10, 0
    loop: start=0, step=1, limit=4
    $region2: #{tpu_custom_call.1} parent=1 // loop_pre_header
      _
    $region3: #{tpu_custom_call.1} parent=1 // loop_header
      %s13 = sphi 0, %s17
      %p14 = scmp.ge.s32.totalorder %s13, 4
      %s21 = sphi 0, %s21
      %s23 = sphi 0, %s21
      %s24 = sphi 0, %s23
      %s38 = sphi 0, %s24
      %s42 = sphi 0, %s42
      %s44 = sphi 0, %s42
      %s45 = sphi 0, %s44
      %s59 = sphi 0, %s45
      %s65 = sphi 0, %s67
      %s68 = sphi 0, %s65
      %s69 = sphi 0, %s68
      %s85 = sphi 0, %s69
      %s91 = sphi 0, %s93
      %s94 = sphi 0, %s91
      %s95 = sphi 0, %s94
      %s111 = sphi 0, %s95
      %s117 = sphi 0, %s119
      %s120 = sphi 0, %s117
      %s121 = sphi 0, %s120
      %s137 = sphi 0, %s121
    $region4: #{tpu_custom_call.1} parent=1 // loop_header_branch
      %16 = sbr.rel (%p14) target = $region8
    $region5: #{tpu_custom_call.1} parent=1 // loop_body
      %s18 = ssub.s32 %s13, 1
      %s19 = ssub.s32 %s13, 2
      %s20 = sadd.s32 %s13, 1
      %s22 = sadd.s32 %s21, 1
      %p25 = scmp.eq.s32.totalorder %s13, 1
      %p26 = scmp.ne.s32.totalorder %s21, %s23
      %p27 = scmp.eq.s32.totalorder %s13, 0
      %p28 = por %p26, %p27
      %p29 = scmp.ne.s32.totalorder %s21, %s23
      %p30 = scmp.eq.s32.totalorder %s18, 1
      %p31 = por %p29, %p30
      %p32 = scmp.ne.s32.totalorder %s23, %s24
      %p33 = scmp.eq.s32.totalorder %s18, 0
      %p34 = por %p32, %p33
      %p35 = scmp.ne.s32.totalorder %s23, %s24
      %p36 = scmp.eq.s32.totalorder %s19, 1
      %p37 = por %p35, %p36
      %p39 = scmp.ne.s32.totalorder %s24, %s38
      %p40 = scmp.eq.s32.totalorder %s19, 0
      %p41 = por %p39, %p40
      %s43 = sadd.s32 %s42, 1
      %p46 = scmp.eq.s32.totalorder %s13, 1
      %p47 = scmp.ne.s32.totalorder %s42, %s44
      %p48 = scmp.eq.s32.totalorder %s13, 0
      %p49 = por %p47, %p48
      %p50 = scmp.ne.s32.totalorder %s42, %s44
      %p51 = scmp.eq.s32.totalorder %s18, 1
      %p52 = por %p50, %p51
      %p53 = scmp.ne.s32.totalorder %s44, %s45
      %p54 = scmp.eq.s32.totalorder %s18, 0
      %p55 = por %p53, %p54
      %p56 = scmp.ne.s32.totalorder %s44, %s45
      %p57 = scmp.eq.s32.totalorder %s19, 1
      %p58 = por %p56, %p57
      %p60 = scmp.ne.s32.totalorder %s45, %s59
      %p61 = scmp.eq.s32.totalorder %s19, 0
      %p62 = por %p60, %p61
      %s63 = ssub.s32 %s13, %s20
      %p64 = scmp.eq.s32.totalorder %s63, 0
      %s66 = sadd.s32 %s65, 1
      %s67 = scalar_select %p64, %s65, %s66
      %p70 = pneg %p64
      %p71 = scmp.eq.s32.totalorder %s13, 1
      %p72 = por %p70, %p71
      %p73 = scmp.ne.s32.totalorder %s65, %s68
      %p74 = scmp.eq.s32.totalorder %s13, 0
      %p75 = por %p73, %p74
      %p76 = scmp.ne.s32.totalorder %s65, %s68
      %p77 = scmp.eq.s32.totalorder %s18, 1
      %p78 = por %p76, %p77
      %p79 = scmp.ne.s32.totalorder %s68, %s69
      %p80 = scmp.eq.s32.totalorder %s18, 0
      %p81 = por %p79, %p80
      %p82 = scmp.ne.s32.totalorder %s68, %s69
      %p83 = scmp.eq.s32.totalorder %s19, 1
      %p84 = por %p82, %p83
      %p86 = scmp.ne.s32.totalorder %s69, %s85
      %p87 = scmp.eq.s32.totalorder %s19, 0
      %p88 = por %p86, %p87
      %s89 = ssub.s32 %s13, %s20
      %p90 = scmp.eq.s32.totalorder %s89, 0
      %s92 = sadd.s32 %s91, 1
      %s93 = scalar_select %p90, %s91, %s92
      %p96 = pneg %p90
      %p97 = scmp.eq.s32.totalorder %s13, 1
      %p98 = por %p96, %p97
      %p99 = scmp.ne.s32.totalorder %s91, %s94
      %p100 = scmp.eq.s32.totalorder %s13, 0
      %p101 = por %p99, %p100
      %p102 = scmp.ne.s32.totalorder %s91, %s94
      %p103 = scmp.eq.s32.totalorder %s18, 1
      %p104 = por %p102, %p103
      %p105 = scmp.ne.s32.totalorder %s94, %s95
      %p106 = scmp.eq.s32.totalorder %s18, 0
      %p107 = por %p105, %p106
      %p108 = scmp.ne.s32.totalorder %s94, %s95
      %p109 = scmp.eq.s32.totalorder %s19, 1
      %p110 = por %p108, %p109
      %p112 = scmp.ne.s32.totalorder %s95, %s111
      %p113 = scmp.eq.s32.totalorder %s19, 0
      %p114 = por %p112, %p113
      %s115 = ssub.s32 %s13, %s20
      %p116 = scmp.eq.s32.totalorder %s115, 0
      %s118 = sadd.s32 %s117, 1
      %s119 = scalar_select %p116, %s117, %s118
      %p122 = pneg %p116
      %p123 = scmp.eq.s32.totalorder %s13, 1
      %p124 = por %p122, %p123
      %p125 = scmp.ne.s32.totalorder %s117, %s120
      %p126 = scmp.eq.s32.totalorder %s13, 0
      %p127 = por %p125, %p126
      %p128 = scmp.ne.s32.totalorder %s117, %s120
      %p129 = scmp.eq.s32.totalorder %s18, 1
      %p130 = por %p128, %p129
      %p131 = scmp.ne.s32.totalorder %s120, %s121
      %p132 = scmp.eq.s32.totalorder %s18, 0
      %p133 = por %p131, %p132
      %p134 = scmp.ne.s32.totalorder %s120, %s121
      %p135 = scmp.eq.s32.totalorder %s19, 1
      %p136 = por %p134, %p135
      %p138 = scmp.ne.s32.totalorder %s121, %s137
      %p139 = scmp.eq.s32.totalorder %s19, 0
      %p140 = por %p138, %p139
      %p141 = scmp.le.s32.totalorder 1, %s13
      %p142 = scmp.lt.s32.totalorder %s13, 3
      %p143 = pnand %p141, %p142
      %p144 = pneg %p143
      // Predicated region
      $region9: #{tpu_custom_call.1} parent=5 // pred_check
        _
      $region10: #{tpu_custom_call.1} parent=5 // pred_check_branch
        %146 = sbr.rel (%p143) target = $region12
      $region11: #{tpu_custom_call.1} parent=5 // pred_region
        %s147 = ssub.s32 %s13, 1
        // Predicated region
        $region13: #{tpu_custom_call.1} parent=11 // pred_check
          %p148 = pneg %p34
        $region14: #{tpu_custom_call.1} parent=11 // pred_check_branch
          %150 = sbr.rel (%p148) target = $region16
        $region15: #{tpu_custom_call.1} parent=11 // pred_region
          _
        $region16: #{tpu_custom_call.1} parent=11 // pred_fallthru
          _
        // Predicated region
        $region17: #{tpu_custom_call.1} parent=11 // pred_check
          %p151 = pneg %p55
        $region18: #{tpu_custom_call.1} parent=11 // pred_check_branch
          %153 = sbr.rel (%p151) target = $region20
        $region19: #{tpu_custom_call.1} parent=11 // pred_region
          _
        $region20: #{tpu_custom_call.1} parent=11 // pred_fallthru
          _
      $region12: #{tpu_custom_call.1} parent=5 // pred_fallthru
        _
      %p154 = scmp.lt.s32.totalorder %s13, 2
      // Predicated region
      $region21: #{tpu_custom_call.1} parent=5 // pred_check
        %p155 = pneg %p154
      $region22: #{tpu_custom_call.1} parent=5 // pred_check_branch
        %157 = sbr.rel (%p155) target = $region24
      $region23: #{tpu_custom_call.1} parent=5 // pred_region
        // Predicated region
        $region25: #{tpu_custom_call.1} parent=23 // pred_check
          %p158 = pneg %p75
        $region26: #{tpu_custom_call.1} parent=23 // pred_check_branch
          %160 = sbr.rel (%p158) target = $region28
        $region27: #{tpu_custom_call.1} parent=23 // pred_region
          %p161 = scmp.lt.s32.totalorder %s13, 2
          %s162 = scalar_select %p161, %s13, 2
          %s163 = smul.addr %s162, 2
          %s164 = scalar_lea.vmem %s2, %s163
        $region28: #{tpu_custom_call.1} parent=23 // pred_fallthru
          _
        // Predicated region
        $region29: #{tpu_custom_call.1} parent=23 // pred_check
          %p165 = pneg %p101
        $region30: #{tpu_custom_call.1} parent=23 // pred_check_branch
          %167 = sbr.rel (%p165) target = $region32
        $region31: #{tpu_custom_call.1} parent=23 // pred_region
          %p168 = scmp.lt.s32.totalorder %s13, 1
          %s169 = scalar_select %p168, %s13, 1
          %s170 = smul.addr %s169, 2
          %s171 = scalar_lea.vmem %s3, %s170
        $region32: #{tpu_custom_call.1} parent=23 // pred_fallthru
          _
      $region24: #{tpu_custom_call.1} parent=5 // pred_fallthru
        _
      %p172 = scmp.le.s32.totalorder 1, %s13
      %p173 = scmp.lt.s32.totalorder %s13, 3
      %p174 = pnand %p172, %p173
      %p175 = pneg %p174
      // Predicated region
      $region33: #{tpu_custom_call.1} parent=5 // pred_check
        _
      $region34: #{tpu_custom_call.1} parent=5 // pred_check_branch
        %177 = sbr.rel (%p174) target = $region36
      $region35: #{tpu_custom_call.1} parent=5 // pred_region
        %s178 = ssub.s32 %s13, 1
        %p179 = pneg %p34
        %p180 = pneg %p31
        %p181 = pneg %p55
        %p182 = pneg %p52
        %p183 = scmp.lt.s32.totalorder %s18, 2
        %s184 = scalar_select %p183, %s18, 2
        %s185 = smul.addr %s184, 2
        %s186 = scalar_lea.vmem %s2, %s185
        %p187 = pneg %p81
        %p188 = pneg %p78
        %p189 = scmp.lt.s32.totalorder %s18, 1
        %s190 = scalar_select %p189, %s18, 1
        %s191 = smul.addr %s190, 2
        %s192 = scalar_lea.vmem %s3, %s191
        %p193 = pneg %p107
        %p194 = pneg %p104
        %p195 = pneg %p133
        %p196 = pneg %p130
        %s197 = sand.u32 %s120, 1
        %s198 = scalar_lea.sflag [#allocation3], %s197
        %s199 = sand.u32 %s120, 1
        %s200 = smul.addr %s199, 8
        %s201 = scalar_lea.vmem [#allocation2], %s200
        %p202 = scmp.lt.s32.totalorder %s18, 2
        %s203 = scalar_select %p202, %s18, 2
        %s204 = smul.addr %s203, 2
        %s205 = scalar_lea.vmem %s2, %s204
        %p206 = scmp.lt.s32.totalorder %s18, 1
        %s207 = scalar_select %p206, %s18, 1
        %s208 = smul.addr %s207, 2
        %s209 = scalar_lea.vmem %s3, %s208
        %v211 = vld [vmem:[%s205] sm:$0x3]
        %v212 = vld [vmem:[%s209] sm:$0x3]
        %v213 = vld [vmem:[%s0] sm:$0xf]
        %vm214 = vcmask 31744
        %v216 = vsel %vm214, %v213, 0
        %vm218 = vcmask 1041408
        %v220 = vsel %vm218, %v211, 0
        %v223 = vsel %vm218, %v212, 0
        %225 = vmatprep.subr.bf16.mxu0 0
        %226 = vmatpush1.bf16.msra.mxu0 0
        %227 = vmatprep.subr.bf16.mxu0 0
        %228 = vmatpush1.bf16.msra.mxu0 0
        %229 = vmatprep.subr.bf16.mxu0 0
        %230 = vmatpush1.bf16.msra.mxu0 0
        %231 = vmatprep.subr.bf16.mxu0 0
        %232 = vmatpush1.bf16.msra.mxu0 0
        %233 = vmatprep.subr.bf16.mxu0 0
        %234 = vmatpush1.bf16.msra.mxu0 0
        %235 = vmatprep.subr.bf16.mxu0 0
        %236 = vmatpush1.bf16.msra.mxu0 0
        %237 = vmatprep.subr.bf16.mxu0 0
        %238 = vmatpush1.bf16.msra.mxu0 0
        %239 = vmatprep.subr.bf16.mxu0 %v223
        %240 = vmatpush1.bf16.msra.mxu0 %v220
        %241 = vmatprep.subr.bf16.mxu0 0
        %242 = vmatpush2.bf16.msra.mxu0 0
        %243 = vmatprep.subr.bf16.mxu0 0
        %244 = vmatpush2.bf16.msra.mxu0 0
        %245 = vmatprep.subr.bf16.mxu0 0
        %246 = vmatpush2.bf16.msra.mxu0 0
        %247 = vmatprep.subr.bf16.mxu0 0
        %248 = vmatpush2.bf16.msra.mxu0 0
        %249 = vmatprep.subr.bf16.mxu0 0
        %250 = vmatpush2.bf16.msra.mxu0 0
        %251 = vmatprep.subr.bf16.mxu0 0
        %252 = vmatpush2.bf16.msra.mxu0 0
        %253 = vmatprep.subr.bf16.mxu0 0
        %254 = vmatpush2.bf16.msra.mxu0 0
        %255 = vmatprep.subr.bf16.mxu0 0
        %256 = vmatpush2.bf16.msra.mxu0 0
        %257 = vmatprep.mubr.bf16.mxu0 0
        %258 = vmatmul.mubr.bf16.gmra.mxu0 %v216
        %v259 = vpop.f32.mrf.mxu0
        %v260 = vadd.f32 0.0, %v259
        %v261 = vpop.f32.mrf.mxu0
        %v262 = vpop.f32.mrf.mxu0
        %v263 = vpop.f32.mrf.mxu0
        %264 = vdwg.mxu0
        %s265 = scalar_lea.vmem %s0, 4
        %v266 = vld [vmem:[%s265] sm:$0xf]
        %v268 = vsel %vm214, %v266, 0
        %270 = vmatprep.subr.bf16.mxu0 0
        %271 = vmatpush1.bf16.msra.mxu0 0
        %272 = vmatprep.subr.bf16.mxu0 0
        %273 = vmatpush1.bf16.msra.mxu0 0
        %274 = vmatprep.subr.bf16.mxu0 0
        %275 = vmatpush1.bf16.msra.mxu0 0
        %276 = vmatprep.subr.bf16.mxu0 0
        %277 = vmatpush1.bf16.msra.mxu0 0
        %278 = vmatprep.subr.bf16.mxu0 0
        %279 = vmatpush1.bf16.msra.mxu0 0
        %280 = vmatprep.subr.bf16.mxu0 0
        %281 = vmatpush1.bf16.msra.mxu0 0
        %282 = vmatprep.subr.bf16.mxu0 0
        %283 = vmatpush1.bf16.msra.mxu0 0
        %284 = vmatprep.subr.bf16.mxu0 %v223
        %285 = vmatpush1.bf16.msra.mxu0 %v220
        %286 = vmatprep.subr.bf16.mxu0 0
        %287 = vmatpush2.bf16.msra.mxu0 0
        %288 = vmatprep.subr.bf16.mxu0 0
        %289 = vmatpush2.bf16.msra.mxu0 0
        %290 = vmatprep.subr.bf16.mxu0 0
        %291 = vmatpush2.bf16.msra.mxu0 0
        %292 = vmatprep.subr.bf16.mxu0 0
        %293 = vmatpush2.bf16.msra.mxu0 0
        %294 = vmatprep.subr.bf16.mxu0 0
        %295 = vmatpush2.bf16.msra.mxu0 0
        %296 = vmatprep.subr.bf16.mxu0 0
        %297 = vmatpush2.bf16.msra.mxu0 0
        %298 = vmatprep.subr.bf16.mxu0 0
        %299 = vmatpush2.bf16.msra.mxu0 0
        %300 = vmatprep.subr.bf16.mxu0 0
        %301 = vmatpush2.bf16.msra.mxu0 0
        %302 = vmatprep.mubr.bf16.mxu0 0
        %303 = vmatmul.mubr.bf16.gmra.mxu0 %v268
        %v304 = vpop.f32.mrf.mxu0
        %v305 = vadd.f32 0.0, %v304
        %v306 = vpop.f32.mrf.mxu0
        %v307 = vadd.f32 0.0, %v306
        %v308 = vpop.f32.mrf.mxu0
        %v309 = vpop.f32.mrf.mxu0
        %310 = vdwg.mxu0
        %313 = vrot.lane.b32.xlu0 %v305, 127
        %v314 = vpop.permute.xlu0 %313
        %315 = vrot.lane.b32.xlu0 %v307, 127
        %v316 = vpop.permute.xlu0 %315
        %vm317 = vcmask 1039360
        %v318 = vsel %vm317, %v314, %v316
        %v320 = vadd.f32 %v260, %v318
        %s321 = scalar_lea.vmem %s0, 8
        %v322 = vld [vmem:[%s321] sm:$0xf]
        %v324 = vsel %vm214, %v322, 0
        %326 = vmatprep.subr.bf16.mxu0 0
        %327 = vmatpush1.bf16.msra.mxu0 0
        %328 = vmatprep.subr.bf16.mxu0 0
        %329 = vmatpush1.bf16.msra.mxu0 0
        %330 = vmatprep.subr.bf16.mxu0 0
        %331 = vmatpush1.bf16.msra.mxu0 0
        %332 = vmatprep.subr.bf16.mxu0 0
        %333 = vmatpush1.bf16.msra.mxu0 0
        %334 = vmatprep.subr.bf16.mxu0 0
        %335 = vmatpush1.bf16.msra.mxu0 0
        %336 = vmatprep.subr.bf16.mxu0 0
        %337 = vmatpush1.bf16.msra.mxu0 0
        %338 = vmatprep.subr.bf16.mxu0 0
        %339 = vmatpush1.bf16.msra.mxu0 0
        %340 = vmatprep.subr.bf16.mxu0 %v223
        %341 = vmatpush1.bf16.msra.mxu0 %v220
        %342 = vmatprep.subr.bf16.mxu0 0
        %343 = vmatpush2.bf16.msra.mxu0 0
        %344 = vmatprep.subr.bf16.mxu0 0
        %345 = vmatpush2.bf16.msra.mxu0 0
        %346 = vmatprep.subr.bf16.mxu0 0
        %347 = vmatpush2.bf16.msra.mxu0 0
        %348 = vmatprep.subr.bf16.mxu0 0
        %349 = vmatpush2.bf16.msra.mxu0 0
        %350 = vmatprep.subr.bf16.mxu0 0
        %351 = vmatpush2.bf16.msra.mxu0 0
        %352 = vmatprep.subr.bf16.mxu0 0
        %353 = vmatpush2.bf16.msra.mxu0 0
        %354 = vmatprep.subr.bf16.mxu0 0
        %355 = vmatpush2.bf16.msra.mxu0 0
        %356 = vmatprep.subr.bf16.mxu0 0
        %357 = vmatpush2.bf16.msra.mxu0 0
        %358 = vmatprep.mubr.bf16.mxu0 0
        %359 = vmatmul.mubr.bf16.gmra.mxu0 %v324
        %v360 = vpop.f32.mrf.mxu0
        %v361 = vadd.f32 0.0, %v360
        %v362 = vpop.f32.mrf.mxu0
        %v363 = vadd.f32 0.0, %v362
        %v364 = vpop.f32.mrf.mxu0
        %v365 = vpop.f32.mrf.mxu0
        %366 = vdwg.mxu0
        %369 = vrot.lane.b32.xlu0 %v361, 126
        %v370 = vpop.permute.xlu0 %369
        %371 = vrot.lane.b32.xlu0 %v363, 126
        %v372 = vpop.permute.xlu0 %371
        %vm373 = vcmask 1031168
        %v374 = vsel %vm373, %v370, %v372
        %v376 = vadd.f32 %v320, %v374
        %s377 = scalar_lea.vmem %s0, 12
        %v378 = vld [vmem:[%s377] sm:$0xf]
        %v380 = vsel %vm214, %v378, 0
        %382 = vmatprep.subr.bf16.mxu0 0
        %383 = vmatpush1.bf16.msra.mxu0 0
        %384 = vmatprep.subr.bf16.mxu0 0
        %385 = vmatpush1.bf16.msra.mxu0 0
        %386 = vmatprep.subr.bf16.mxu0 0
        %387 = vmatpush1.bf16.msra.mxu0 0
        %388 = vmatprep.subr.bf16.mxu0 0
        %389 = vmatpush1.bf16.msra.mxu0 0
        %390 = vmatprep.subr.bf16.mxu0 0
        %391 = vmatpush1.bf16.msra.mxu0 0
        %392 = vmatprep.subr.bf16.mxu0 0
        %393 = vmatpush1.bf16.msra.mxu0 0
        %394 = vmatprep.subr.bf16.mxu0 0
        %395 = vmatpush1.bf16.msra.mxu0 0
        %396 = vmatprep.subr.bf16.mxu0 %v223
        %397 = vmatpush1.bf16.msra.mxu0 %v220
        %398 = vmatprep.subr.bf16.mxu0 0
        %399 = vmatpush2.bf16.msra.mxu0 0
        %400 = vmatprep.subr.bf16.mxu0 0
        %401 = vmatpush2.bf16.msra.mxu0 0
        %402 = vmatprep.subr.bf16.mxu0 0
        %403 = vmatpush2.bf16.msra.mxu0 0
        %404 = vmatprep.subr.bf16.mxu0 0
        %405 = vmatpush2.bf16.msra.mxu0 0
        %406 = vmatprep.subr.bf16.mxu0 0
        %407 = vmatpush2.bf16.msra.mxu0 0
        %408 = vmatprep.subr.bf16.mxu0 0
        %409 = vmatpush2.bf16.msra.mxu0 0
        %410 = vmatprep.subr.bf16.mxu0 0
        %411 = vmatpush2.bf16.msra.mxu0 0
        %412 = vmatprep.subr.bf16.mxu0 0
        %413 = vmatpush2.bf16.msra.mxu0 0
        %414 = vmatprep.mubr.bf16.mxu0 0
        %415 = vmatmul.mubr.bf16.gmra.mxu0 %v380
        %v416 = vpop.f32.mrf.mxu0
        %v417 = vadd.f32 0.0, %v416
        %v418 = vpop.f32.mrf.mxu0
        %v419 = vadd.f32 0.0, %v418
        %v420 = vpop.f32.mrf.mxu0
        %v421 = vpop.f32.mrf.mxu0
        %422 = vdwg.mxu0
        %425 = vrot.lane.b32.xlu0 %v417, 118
        %v426 = vpop.permute.xlu0 %425
        %427 = vrot.lane.b32.xlu0 %v419, 118
        %v428 = vpop.permute.xlu0 %427
        %vm429 = vcmask 965632
        %v430 = vsel %vm429, %v426, %v428
        %v432 = vadd.f32 %v376, %v430
        %s433 = scalar_lea.vmem %s0, 16
        %v434 = vld [vmem:[%s433] sm:$0xf]
        %v436 = vsel %vm214, %v434, 0
        %438 = vmatprep.subr.bf16.mxu0 0
        %439 = vmatpush1.bf16.msra.mxu0 0
        %440 = vmatprep.subr.bf16.mxu0 0
        %441 = vmatpush1.bf16.msra.mxu0 0
        %442 = vmatprep.subr.bf16.mxu0 0
        %443 = vmatpush1.bf16.msra.mxu0 0
        %444 = vmatprep.subr.bf16.mxu0 0
        %445 = vmatpush1.bf16.msra.mxu0 0
        %446 = vmatprep.subr.bf16.mxu0 0
        %447 = vmatpush1.bf16.msra.mxu0 0
        %448 = vmatprep.subr.bf16.mxu0 0
        %449 = vmatpush1.bf16.msra.mxu0 0
        %450 = vmatprep.subr.bf16.mxu0 0
        %451 = vmatpush1.bf16.msra.mxu0 0
        %452 = vmatprep.subr.bf16.mxu0 %v223
        %453 = vmatpush1.bf16.msra.mxu0 %v220
        %454 = vmatprep.subr.bf16.mxu0 0
        %455 = vmatpush2.bf16.msra.mxu0 0
        %456 = vmatprep.subr.bf16.mxu0 0
        %457 = vmatpush2.bf16.msra.mxu0 0
        %458 = vmatprep.subr.bf16.mxu0 0
        %459 = vmatpush2.bf16.msra.mxu0 0
        %460 = vmatprep.subr.bf16.mxu0 0
        %461 = vmatpush2.bf16.msra.mxu0 0
        %462 = vmatprep.subr.bf16.mxu0 0
        %463 = vmatpush2.bf16.msra.mxu0 0
        %464 = vmatprep.subr.bf16.mxu0 0
        %465 = vmatpush2.bf16.msra.mxu0 0
        %466 = vmatprep.subr.bf16.mxu0 0
        %467 = vmatpush2.bf16.msra.mxu0 0
        %468 = vmatprep.subr.bf16.mxu0 0
        %469 = vmatpush2.bf16.msra.mxu0 0
        %470 = vmatprep.mubr.bf16.mxu0 0
        %471 = vmatmul.mubr.bf16.gmra.mxu0 %v436
        %v472 = vpop.f32.mrf.mxu0
        %v473 = vadd.f32 0.0, %v472
        %v474 = vpop.f32.mrf.mxu0
        %v475 = vadd.f32 0.0, %v474
        %v476 = vpop.f32.mrf.mxu0
        %v477 = vpop.f32.mrf.mxu0
        %478 = vdwg.mxu0
        %481 = vrot.lane.b32.xlu0 %v473, 117
        %v482 = vpop.permute.xlu0 %481
        %483 = vrot.lane.b32.xlu0 %v475, 117
        %v484 = vpop.permute.xlu0 %483
        %vm485 = vcmask 957440
        %v486 = vsel %vm485, %v482, %v484
        %v488 = vadd.f32 %v432, %v486
        %s489 = scalar_lea.vmem %s0, 20
        %v490 = vld [vmem:[%s489] sm:$0xf]
        %v492 = vsel %vm214, %v490, 0
        %494 = vmatprep.subr.bf16.mxu0 0
        %495 = vmatpush1.bf16.msra.mxu0 0
        %496 = vmatprep.subr.bf16.mxu0 0
        %497 = vmatpush1.bf16.msra.mxu0 0
        %498 = vmatprep.subr.bf16.mxu0 0
        %499 = vmatpush1.bf16.msra.mxu0 0
        %500 = vmatprep.subr.bf16.mxu0 0
        %501 = vmatpush1.bf16.msra.mxu0 0
        %502 = vmatprep.subr.bf16.mxu0 0
        %503 = vmatpush1.bf16.msra.mxu0 0
        %504 = vmatprep.subr.bf16.mxu0 0
        %505 = vmatpush1.bf16.msra.mxu0 0
        %506 = vmatprep.subr.bf16.mxu0 0
        %507 = vmatpush1.bf16.msra.mxu0 0
        %508 = vmatprep.subr.bf16.mxu0 %v223
        %509 = vmatpush1.bf16.msra.mxu0 %v220
        %510 = vmatprep.subr.bf16.mxu0 0
        %511 = vmatpush2.bf16.msra.mxu0 0
        %512 = vmatprep.subr.bf16.mxu0 0
        %513 = vmatpush2.bf16.msra.mxu0 0
        %514 = vmatprep.subr.bf16.mxu0 0
        %515 = vmatpush2.bf16.msra.mxu0 0
        %516 = vmatprep.subr.bf16.mxu0 0
        %517 = vmatpush2.bf16.msra.mxu0 0
        %518 = vmatprep.subr.bf16.mxu0 0
        %519 = vmatpush2.bf16.msra.mxu0 0
        %520 = vmatprep.subr.bf16.mxu0 0
        %521 = vmatpush2.bf16.msra.mxu0 0
        %522 = vmatprep.subr.bf16.mxu0 0
        %523 = vmatpush2.bf16.msra.mxu0 0
        %524 = vmatprep.subr.bf16.mxu0 0
        %525 = vmatpush2.bf16.msra.mxu0 0
        %526 = vmatprep.mubr.bf16.mxu0 0
        %527 = vmatmul.mubr.bf16.gmra.mxu0 %v492
        %v528 = vpop.f32.mrf.mxu0
        %v529 = vadd.f32 0.0, %v528
        %v530 = vpop.f32.mrf.mxu0
        %v531 = vadd.f32 0.0, %v530
        %v532 = vpop.f32.mrf.mxu0
        %v533 = vpop.f32.mrf.mxu0
        %534 = vdwg.mxu0
        %537 = vrot.lane.b32.xlu0 %v529, 116
        %v538 = vpop.permute.xlu0 %537
        %539 = vrot.lane.b32.xlu0 %v531, 116
        %v540 = vpop.permute.xlu0 %539
        %vm541 = vcmask 949248
        %v542 = vsel %vm541, %v538, %v540
        %v544 = vadd.f32 %v488, %v542
        %s545 = scalar_lea.vmem %s0, 24
        %v546 = vld [vmem:[%s545] sm:$0xf]
        %v548 = vsel %vm214, %v546, 0
        %550 = vmatprep.subr.bf16.mxu0 0
        %551 = vmatpush1.bf16.msra.mxu0 0
        %552 = vmatprep.subr.bf16.mxu0 0
        %553 = vmatpush1.bf16.msra.mxu0 0
        %554 = vmatprep.subr.bf16.mxu0 0
        %555 = vmatpush1.bf16.msra.mxu0 0
        %556 = vmatprep.subr.bf16.mxu0 0
        %557 = vmatpush1.bf16.msra.mxu0 0
        %558 = vmatprep.subr.bf16.mxu0 0
        %559 = vmatpush1.bf16.msra.mxu0 0
        %560 = vmatprep.subr.bf16.mxu0 0
        %561 = vmatpush1.bf16.msra.mxu0 0
        %562 = vmatprep.subr.bf16.mxu0 0
        %563 = vmatpush1.bf16.msra.mxu0 0
        %564 = vmatprep.subr.bf16.mxu0 %v223
        %565 = vmatpush1.bf16.msra.mxu0 %v220
        %566 = vmatprep.subr.bf16.mxu0 0
        %567 = vmatpush2.bf16.msra.mxu0 0
        %568 = vmatprep.subr.bf16.mxu0 0
        %569 = vmatpush2.bf16.msra.mxu0 0
        %570 = vmatprep.subr.bf16.mxu0 0
        %571 = vmatpush2.bf16.msra.mxu0 0
        %572 = vmatprep.subr.bf16.mxu0 0
        %573 = vmatpush2.bf16.msra.mxu0 0
        %574 = vmatprep.subr.bf16.mxu0 0
        %575 = vmatpush2.bf16.msra.mxu0 0
        %576 = vmatprep.subr.bf16.mxu0 0
        %577 = vmatpush2.bf16.msra.mxu0 0
        %578 = vmatprep.subr.bf16.mxu0 0
        %579 = vmatpush2.bf16.msra.mxu0 0
        %580 = vmatprep.subr.bf16.mxu0 0
        %581 = vmatpush2.bf16.msra.mxu0 0
        %582 = vmatprep.mubr.bf16.mxu0 0
        %583 = vmatmul.mubr.bf16.gmra.mxu0 %v548
        %v584 = vpop.f32.mrf.mxu0
        %v585 = vadd.f32 0.0, %v584
        %v586 = vpop.f32.mrf.mxu0
        %v587 = vadd.f32 0.0, %v586
        %v588 = vpop.f32.mrf.mxu0
        %v589 = vpop.f32.mrf.mxu0
        %590 = vdwg.mxu0
        %593 = vrot.lane.b32.xlu0 %v585, 108
        %v594 = vpop.permute.xlu0 %593
        %595 = vrot.lane.b32.xlu0 %v587, 108
        %v596 = vpop.permute.xlu0 %595
        %vm597 = vcmask 883712
        %v598 = vsel %vm597, %v594, %v596
        %v600 = vadd.f32 %v544, %v598
        %s601 = scalar_lea.vmem %s0, 28
        %v602 = vld [vmem:[%s601] sm:$0xf]
        %v604 = vsel %vm214, %v602, 0
        %606 = vmatprep.subr.bf16.mxu0 0
        %607 = vmatpush1.bf16.msra.mxu0 0
        %608 = vmatprep.subr.bf16.mxu0 0
        %609 = vmatpush1.bf16.msra.mxu0 0
        %610 = vmatprep.subr.bf16.mxu0 0
        %611 = vmatpush1.bf16.msra.mxu0 0
        %612 = vmatprep.subr.bf16.mxu0 0
        %613 = vmatpush1.bf16.msra.mxu0 0
        %614 = vmatprep.subr.bf16.mxu0 0
        %615 = vmatpush1.bf16.msra.mxu0 0
        %616 = vmatprep.subr.bf16.mxu0 0
        %617 = vmatpush1.bf16.msra.mxu0 0
        %618 = vmatprep.subr.bf16.mxu0 0
        %619 = vmatpush1.bf16.msra.mxu0 0
        %620 = vmatprep.subr.bf16.mxu0 %v223
        %621 = vmatpush1.bf16.msra.mxu0 %v220
        %622 = vmatprep.subr.bf16.mxu0 0
        %623 = vmatpush2.bf16.msra.mxu0 0
        %624 = vmatprep.subr.bf16.mxu0 0
        %625 = vmatpush2.bf16.msra.mxu0 0
        %626 = vmatprep.subr.bf16.mxu0 0
        %627 = vmatpush2.bf16.msra.mxu0 0
        %628 = vmatprep.subr.bf16.mxu0 0
        %629 = vmatpush2.bf16.msra.mxu0 0
        %630 = vmatprep.subr.bf16.mxu0 0
        %631 = vmatpush2.bf16.msra.mxu0 0
        %632 = vmatprep.subr.bf16.mxu0 0
        %633 = vmatpush2.bf16.msra.mxu0 0
        %634 = vmatprep.subr.bf16.mxu0 0
        %635 = vmatpush2.bf16.msra.mxu0 0
        %636 = vmatprep.subr.bf16.mxu0 0
        %637 = vmatpush2.bf16.msra.mxu0 0
        %638 = vmatprep.mubr.bf16.mxu0 0
        %639 = vmatmul.mubr.bf16.gmra.mxu0 %v604
        %v640 = vpop.f32.mrf.mxu0
        %v641 = vadd.f32 0.0, %v640
        %v642 = vpop.f32.mrf.mxu0
        %v643 = vadd.f32 0.0, %v642
        %v644 = vpop.f32.mrf.mxu0
        %v645 = vpop.f32.mrf.mxu0
        %646 = vdwg.mxu0
        %649 = vrot.lane.b32.xlu0 %v641, 107
        %v650 = vpop.permute.xlu0 %649
        %651 = vrot.lane.b32.xlu0 %v643, 107
        %v652 = vpop.permute.xlu0 %651
        %vm653 = vcmask 875520
        %v654 = vsel %vm653, %v650, %v652
        %v656 = vadd.f32 %v600, %v654
        %s657 = scalar_lea.vmem %s0, 32
        %v658 = vld [vmem:[%s657] sm:$0xf]
        %v660 = vsel %vm214, %v658, 0
        %662 = vmatprep.subr.bf16.mxu0 0
        %663 = vmatpush1.bf16.msra.mxu0 0
        %664 = vmatprep.subr.bf16.mxu0 0
        %665 = vmatpush1.bf16.msra.mxu0 0
        %666 = vmatprep.subr.bf16.mxu0 0
        %667 = vmatpush1.bf16.msra.mxu0 0
        %668 = vmatprep.subr.bf16.mxu0 0
        %669 = vmatpush1.bf16.msra.mxu0 0
        %670 = vmatprep.subr.bf16.mxu0 0
        %671 = vmatpush1.bf16.msra.mxu0 0
        %672 = vmatprep.subr.bf16.mxu0 0
        %673 = vmatpush1.bf16.msra.mxu0 0
        %674 = vmatprep.subr.bf16.mxu0 0
        %675 = vmatpush1.bf16.msra.mxu0 0
        %676 = vmatprep.subr.bf16.mxu0 %v223
        %677 = vmatpush1.bf16.msra.mxu0 %v220
        %678 = vmatprep.subr.bf16.mxu0 0
        %679 = vmatpush2.bf16.msra.mxu0 0
        %680 = vmatprep.subr.bf16.mxu0 0
        %681 = vmatpush2.bf16.msra.mxu0 0
        %682 = vmatprep.subr.bf16.mxu0 0
        %683 = vmatpush2.bf16.msra.mxu0 0
        %684 = vmatprep.subr.bf16.mxu0 0
        %685 = vmatpush2.bf16.msra.mxu0 0
        %686 = vmatprep.subr.bf16.mxu0 0
        %687 = vmatpush2.bf16.msra.mxu0 0
        %688 = vmatprep.subr.bf16.mxu0 0
        %689 = vmatpush2.bf16.msra.mxu0 0
        %690 = vmatprep.subr.bf16.mxu0 0
        %691 = vmatpush2.bf16.msra.mxu0 0
        %692 = vmatprep.subr.bf16.mxu0 0
        %693 = vmatpush2.bf16.msra.mxu0 0
        %694 = vmatprep.mubr.bf16.mxu0 0
        %695 = vmatmul.mubr.bf16.gmra.mxu0 %v660
        %v696 = vpop.f32.mrf.mxu0
        %v697 = vadd.f32 0.0, %v696
        %v698 = vpop.f32.mrf.mxu0
        %v699 = vadd.f32 0.0, %v698
        %v700 = vpop.f32.mrf.mxu0
        %v701 = vpop.f32.mrf.mxu0
        %702 = vdwg.mxu0
        %705 = vrot.lane.b32.xlu0 %v697, 106
        %v706 = vpop.permute.xlu0 %705
        %707 = vrot.lane.b32.xlu0 %v699, 106
        %v708 = vpop.permute.xlu0 %707
        %vm709 = vcmask 867328
        %v710 = vsel %vm709, %v706, %v708
        %v712 = vadd.f32 %v656, %v710
        %v713 = vld [vmem:[%s1] sm:$0xff]
        %715 = vset.pattern.permute.xlu0 0
        %716 = vperm.xlu0 %715, %v713
        %v717 = vpop.permute.xlu0 %716
        %v719 = vadd.f32 %v712, %v717
        %720 = vst [vmem:[%s201] sm:$0xff] %v719
        %s721 = sand.u32 %s120, 1
        %s722 = scalar_lea.sflag [#allocation3], %s721
        %s723 = sand.u32 %s120, 1
        %s724 = smul.addr %s723, 8
        %s725 = scalar_lea.vmem [#allocation2], %s724
        // Predicated region
        $region37: #{tpu_custom_call.1} parent=35 // pred_check
          %p726 = pneg %p130
        $region38: #{tpu_custom_call.1} parent=35 // pred_check_branch
          %728 = sbr.rel (%p726) target = $region40
        $region39: #{tpu_custom_call.1} parent=35 // pred_region
          %s730 = ssub.s32 128, 128
          %731 = vsyncadd %s722, %s730
          %s732 = smul.addr %s18, 128
          %s733 = scalar_lea.hbm %s4, %s732
          %s735 = sshll.u32 %s725, 4
          %s736 = int_to_ptr.vmem [resolvable:$true] %s735
          %738 = dma.vmem_to_hbm [thread:$0]  %s736, 128, %s733, %s722
        $region40: #{tpu_custom_call.1} parent=35 // pred_fallthru
          _
      $region36: #{tpu_custom_call.1} parent=5 // pred_fallthru
        _
      %p739 = scmp.le.s32.totalorder 2, %s13
      // Predicated region
      $region41: #{tpu_custom_call.1} parent=5 // pred_check
        %p740 = pneg %p739
      $region42: #{tpu_custom_call.1} parent=5 // pred_check_branch
        %742 = sbr.rel (%p740) target = $region44
      $region43: #{tpu_custom_call.1} parent=5 // pred_region
        %s743 = ssub.s32 %s13, 2
        // Predicated region
        $region45: #{tpu_custom_call.1} parent=43 // pred_check
          %p744 = pneg %p136
        $region46: #{tpu_custom_call.1} parent=43 // pred_check_branch
          %746 = sbr.rel (%p744) target = $region48
        $region47: #{tpu_custom_call.1} parent=43 // pred_region
          %s747 = sand.u32 %s121, 1
          %s748 = scalar_lea.sflag [#allocation3], %s747
          %s749 = sand.u32 %s121, 1
          %s750 = smul.addr %s749, 8
          %s751 = scalar_lea.vmem [#allocation2], %s750
          %752 = dma.done %s748, 128
        $region48: #{tpu_custom_call.1} parent=43 // pred_fallthru
          _
      $region44: #{tpu_custom_call.1} parent=5 // pred_fallthru
        _
    $region6: #{tpu_custom_call.1} parent=1 // loop_footer
      %s17 = sadd.s32 1, %s13
    $region7: #{tpu_custom_call.1} parent=1 // loop_footer_branch
      %12 = sbr.rel target = $region3
    $region8: #{tpu_custom_call.1} parent=1 // loop_exit
      _
    %753 = vsyncpa [#allocation3], 1
    %s754 = scalar_lea.sflag [#allocation3], 1
    %755 = vsyncpa %s754, 1

</llo_original>
